<compile_context>
chip_gen: v5e
topology: v5e:2x2
jax: 0.10.0
libtpu: 0.0.40
codegen_flags: <defaults>
</compile_context>

<pallas_src>
import functools

import jax
import jax.numpy as jnp
from jax.experimental import pallas as pl
from jax.experimental.pallas import tpu as pltpu

EPS = 1e-5
LANE = 128
SUBLANE = 8


def _cdiv(a, b):
    return (a + b - 1) // b


def _round_down(v, m):
    return (v // m) * m


def _vmem_budgets():
    """Returns (per-tile byte budget, vmem_limit_bytes), generation aware."""
    phys = 128 * 1024 * 1024
    try:
        phys = int(getattr(pltpu.get_tpu_info(), "vmem_capacity_bytes", phys))
    except Exception:
        pass
    if phys <= 64 * 1024 * 1024:
        # v7x-class: 64 MiB physical / 32 MiB scoped -> cap tiles at ~3 MiB.
        return 3 * 1024 * 1024, 30 * 1024 * 1024
    # v5e / v6e: 128 MiB physical; raise scoped limit past v5e's 16 MiB default.
    return 6 * 1024 * 1024, 64 * 1024 * 1024


def _replica_combine(v, replicas):
    """v: (1, 128) per-(replica, feature) partials; lane axis is `replicas`
    contiguous groups of C features.  Returns (1, 128) where every group holds
    the full per-feature sum (log2(replicas) lane rotates + adds on the XLU)."""
    if replicas == 1:
        return v
    shift = v.shape[-1] // replicas
    while shift < v.shape[-1]:
        v = v + pltpu.roll(v, shift=shift, axis=1)
        shift *= 2
    return v


# ----------------------------------------------------------------------------
# Single-pass kernel: whole batch (N) resident per feature tile.
# ----------------------------------------------------------------------------
def _bn_single_pass_kernel(x_ref, gamma_ref, beta_ref, o_ref, *, inv_n, replicas):
    # Stats sweep.
    xf = x_ref[...].astype(jnp.float32)                        # (N, TC)
    s = _replica_combine(jnp.sum(xf, axis=0, keepdims=True), replicas)
    ss = _replica_combine(jnp.sum(xf * xf, axis=0, keepdims=True), replicas)
    mean = s * inv_n
    var = jnp.maximum(ss * inv_n - mean * mean, 0.0)           # clamp cancellation
    inv_std = jax.lax.rsqrt(var + EPS)
    scale = inv_std * gamma_ref[...].astype(jnp.float32)       # (1, TC)
    bias = beta_ref[...].astype(jnp.float32) - mean * scale    # (1, TC)
    # Apply sweep: fresh read so the full-tile f32 temporary need not stay live.
    o_ref[...] = (x_ref[...].astype(jnp.float32) * scale + bias).astype(o_ref.dtype)


# ----------------------------------------------------------------------------
# Two-pass kernels: pass 1 accumulates per-feature sums across N-tiles and
# folds stats + affine into scale/bias; pass 2 applies y = x*scale + bias.
# ----------------------------------------------------------------------------
def _bn_stats_kernel(x_ref, gamma_ref, beta_ref, scale_ref, bias_ref,
                     sum_sc, sumsq_sc, *, n_rows, inv_n, replicas):
    # grid = (C_tiles, N_tiles); N (reduction) axis is last / "arbitrary".
    j = pl.program_id(1)
    last = pl.num_programs(1) - 1
    tn = x_ref.shape[0]

    @pl.when(j == 0)
    def _():
        sum_sc[...] = jnp.zeros_like(sum_sc)
        sumsq_sc[...] = jnp.zeros_like(sumsq_sc)

    def accumulate(xf):
        sum_sc[...] += jnp.sum(xf, axis=0, keepdims=True)
        sumsq_sc[...] += jnp.sum(xf * xf, axis=0, keepdims=True)

    @pl.when(j != last)
    def _():
        accumulate(x_ref[...].astype(jnp.float32))

    @pl.when(j == last)
    def _():
        # Mask rows past the true row count on the (possibly ragged) last
        # N-tile; select keeps any garbage NaN/Inf out of the sums.
        rows = j * tn + jax.lax.broadcasted_iota(jnp.int32, x_ref.shape, 0)
        xf = jnp.where(rows < n_rows, x_ref[...].astype(jnp.float32), 0.0)
        accumulate(xf)
        # Finalize: fold stats + affine into per-feature scale / bias so the
        # apply pass is one FMA per element and there is no intermediate
        # sums/sumsq HBM round-trip.
        s = _replica_combine(sum_sc[...], replicas)
        ss = _replica_combine(sumsq_sc[...], replicas)
        mean = s * inv_n
        var = jnp.maximum(ss * inv_n - mean * mean, 0.0)
        inv_std = jax.lax.rsqrt(var + EPS)
        sc = inv_std * gamma_ref[...].astype(jnp.float32)
        scale_ref[...] = sc
        bias_ref[...] = beta_ref[...].astype(jnp.float32) - mean * sc


def _bn_apply_kernel(x_ref, scale_ref, bias_ref, o_ref):
    o_ref[...] = (x_ref[...].astype(jnp.float32) * scale_ref[...]
                  + bias_ref[...]).astype(o_ref.dtype)


# ----------------------------------------------------------------------------
# Wrapper
# ----------------------------------------------------------------------------
def conditional_batch_norm_1d(
    x,
    gamma,
    beta,
    *,
    single_pass_max_tile_bytes=None,
    target_tile_bytes=None,
):
    """x: (N, C). gamma, beta: (C,). Returns (N, C)."""
    n, c = x.shape
    if n == 1:
        # ConditionalBatchNorm1d: identity when batch size == 1.
        return x

    out_dtype = x.dtype
    auto_budget, vmem_limit = _vmem_budgets()
    tile_budget = target_tile_bytes or auto_budget
    single_pass_budget = single_pass_max_tile_bytes or auto_budget
    itemsize = 4  # budgets sized for f32 temporaries (conservative)
    inv_n = 1.0 / n

    def _cparams(sem):
        return pltpu.CompilerParams(dimension_semantics=sem,
                                    vmem_limit_bytes=vmem_limit)

    # ---- small-C lane repacking: fold r = 128 // C batch rows per lane row.
    replicas = 1
    if c < LANE and LANE % c == 0 and n % (LANE // c) == 0:
        replicas = LANE // c
    n_rows = n // replicas            # rows of the (packed) working array
    c_lanes = c * replicas            # lanes of the (packed) working array
    xw = x.reshape(n_rows, c_lanes) if replicas > 1 else x   # contiguous: free
    gamma2d = gamma.reshape(1, c)
    beta2d = beta.reshape(1, c)
    if replicas > 1:
        gamma2d = jnp.tile(gamma2d, (1, replicas))
        beta2d = jnp.tile(beta2d, (1, replicas))

    tc_min = min(LANE, c_lanes)

    # ---------------- single-pass path (full N per feature tile) -----------
    if n_rows * tc_min * itemsize <= single_pass_budget:
        tc = tc_min
        while (
            tc * 2 <= 2048
            and _cdiv(c_lanes, tc * 2) >= 2                       # never < 2 steps
            and n_rows * (tc * 2) * itemsize <= tile_budget
            and (_cdiv(c_lanes, tc * 2) >= 8                      # keep >=8 steps
                 or n_rows * tc * itemsize < 256 * 1024)          # unless tiles tiny
        ):
            tc *= 2
        grid_c = _cdiv(c_lanes, tc)

        out = pl.pallas_call(
            functools.partial(_bn_single_pass_kernel, inv_n=inv_n,
                              replicas=replicas),
            out_shape=jax.ShapeDtypeStruct((n_rows, c_lanes), out_dtype),
            grid=(grid_c,),
            in_specs=[
                pl.BlockSpec((n_rows, tc), lambda i: (0, i)),
                pl.BlockSpec((1, tc), lambda i: (0, i)),
                pl.BlockSpec((1, tc), lambda i: (0, i)),
            ],
            out_specs=pl.BlockSpec((n_rows, tc), lambda i: (0, i)),
            compiler_params=_cparams(("parallel",)),
        )(xw, gamma2d, beta2d)
        return out.reshape(n, c) if replicas > 1 else out

    # ---------------- two-pass path (N too large for a full-N slab) --------
    # Wide feature tiles (long HBM bursts); row tile sized from the budget.
    if c_lanes > LANE:
        tc = min(1024, _round_down(c_lanes, LANE))
    else:
        tc = c_lanes
    if n_rows <= SUBLANE:
        tn = n_rows
    else:
        tn_budget = (tile_budget // (tc * itemsize)) // SUBLANE * SUBLANE
        tn = max(SUBLANE, min(tn_budget, _round_down(n_rows, SUBLANE)))
    grid_c = _cdiv(c_lanes, tc)
    grid_n = _cdiv(n_rows, tn)

    # Pass 1: per-feature sums (masked ragged last N-tile) -> folded scale/bias.
    scale, bias = pl.pallas_call(
        functools.partial(_bn_stats_kernel, n_rows=n_rows, inv_n=inv_n,
                          replicas=replicas),
        out_shape=(
            jax.ShapeDtypeStruct((1, c_lanes), jnp.float32),
            jax.ShapeDtypeStruct((1, c_lanes), jnp.float32),
        ),
        grid=(grid_c, grid_n),
        in_specs=[
            pl.BlockSpec((tn, tc), lambda i, j: (j, i)),
            pl.BlockSpec((1, tc), lambda i, j: (0, i)),
            pl.BlockSpec((1, tc), lambda i, j: (0, i)),
        ],
        out_specs=(
            pl.BlockSpec((1, tc), lambda i, j: (0, i)),
            pl.BlockSpec((1, tc), lambda i, j: (0, i)),
        ),
        scratch_shapes=[pltpu.VMEM((1, tc), jnp.float32),
                        pltpu.VMEM((1, tc), jnp.float32)],
        compiler_params=_cparams(("parallel", "arbitrary")),
    )(xw, gamma2d, beta2d)

    # Pass 2: y = x * scale + bias, fully parallel over both tile axes.
    out = pl.pallas_call(
        _bn_apply_kernel,
        out_shape=jax.ShapeDtypeStruct((n_rows, c_lanes), out_dtype),
        grid=(grid_c, grid_n),
        in_specs=[
            pl.BlockSpec((tn, tc), lambda i, j: (j, i)),
            pl.BlockSpec((1, tc), lambda i, j: (0, i)),
            pl.BlockSpec((1, tc), lambda i, j: (0, i)),
        ],
        out_specs=pl.BlockSpec((tn, tc), lambda i, j: (j, i)),
        compiler_params=_cparams(("parallel", "parallel")),
    )(xw, scale, bias)
    return out.reshape(n, c) if replicas > 1 else out


# ----------------------------------------------------------------------------
# Pure-JAX reference
# ----------------------------------------------------------------------------
def _reference(x, gamma, beta):
    if x.shape[0] == 1:
        return x
    mean = jnp.mean(x, axis=0, keepdims=True)
    var = jnp.mean((x - mean) ** 2, axis=0, keepdims=True)
    return (x - mean) / jnp.sqrt(var + EPS) * gamma[None, :] + beta[None, :]


if __name__ == "__main__":
    key = jax.random.PRNGKey(0)
    k1, k2, k3, k4 = jax.random.split(key, 4)

    # A) BatchNorm1d(32), batch 8 -> repacked (lane-dense) single-pass path.
    n_a, c_a = 8, 32
    x_a = jax.random.normal(k1, (n_a, c_a), dtype=jnp.float32)
    g_a = jnp.ones((c_a,), jnp.float32)    # nn.BatchNorm1d init
    b_a = jnp.zeros((c_a,), jnp.float32)
    out_a = jax.block_until_ready(conditional_batch_norm_1d(x_a, g_a, b_a))
    ref_a = _reference(x_a, g_a, b_a)
    assert out_a.shape == ref_a.shape, (out_a.shape, ref_a.shape)
    assert jnp.allclose(out_a, ref_a, atol=1e-4, rtol=1e-4), "single-pass (repacked) mismatch"

    # B) batch == 1 identity branch.
    x_b = jax.random.normal(k2, (1, c_a), dtype=jnp.float32)
    out_b = jax.block_until_ready(conditional_batch_norm_1d(x_b, g_a, b_a))
    assert jnp.array_equal(out_b, x_b), "batch==1 branch should be identity"

    # C) C not a multiple of 128 -> multi-tile single-pass with ragged C-tile.
    n_c, c_c = 32, 384
    x_c = jax.random.normal(k3, (n_c, c_c), dtype=jnp.float32)
    g_c = 1.0 + 0.1 * jax.random.normal(k4, (c_c,), dtype=jnp.float32)
    b_c = 0.1 * jax.random.normal(k3, (c_c,), dtype=jnp.float32)
    out_c = jax.block_until_ready(conditional_batch_norm_1d(x_c, g_c, b_c))
    assert jnp.allclose(out_c, _reference(x_c, g_c, b_c), atol=1e-4, rtol=1e-4), \
        "single-pass (tiled) mismatch"

    # D) Forced two-pass path with ragged N (60) and ragged C (200), no pads.
    n_d, c_d = 60, 200
    x_d = jax.random.normal(k4, (n_d, c_d), dtype=jnp.float32)
    g_d = 1.0 + 0.1 * jax.random.normal(k1, (c_d,), dtype=jnp.float32)
    b_d = 0.1 * jax.random.normal(k2, (c_d,), dtype=jnp.float32)
    out_d = jax.block_until_ready(conditional_batch_norm_1d(
        x_d, g_d, b_d, single_pass_max_tile_bytes=1024, target_tile_bytes=4096))
    assert jnp.allclose(out_d, _reference(x_d, g_d, b_d), atol=1e-4, rtol=1e-4), \
        "two-pass mismatch"

    # E) Forced two-pass path with small-C repacking.
    n_e, c_e = 64, 32
    x_e = jax.random.normal(k2, (n_e, c_e), dtype=jnp.float32)
    g_e = 1.0 + 0.1 * jax.random.normal(k3, (c_e,), dtype=jnp.float32)
    b_e = 0.1 * jax.random.normal(k4, (c_e,), dtype=jnp.float32)
    out_e = jax.block_until_ready(conditional_batch_norm_1d(
        x_e, g_e, b_e, single_pass_max_tile_bytes=1024, target_tile_bytes=4096))
    assert jnp.allclose(out_e, _reference(x_e, g_e, b_e), atol=1e-4, rtol=1e-4), \
        "two-pass (repacked) mismatch"

    print("KERNEL_OK")
</pallas_src>

<mosaic_0001>
module attributes {stable_mosaic.version = 11 : i64} {
  func.func @_bn_single_pass_kernel(%arg0: i32, %arg1: memref<2x128xf32, #tpu.memory_space<vmem>>, %arg2: memref<1x128xf32, #tpu.memory_space<vmem>>, %arg3: memref<1x128xf32, #tpu.memory_space<vmem>>, %arg4: memref<2x128xf32, #tpu.memory_space<vmem>>) attributes {dimension_semantics = [#tpu.dimension_semantics<parallel>], iteration_bounds = array<i64: 1>, scalar_prefetch = 0 : i64, scratch_operands = 0 : i64, tpu.core_type = #tpu.core_type<tc>, window_params = [{transform_indices = @transform_0, window_bounds = array<i64: 2, 128>}, {transform_indices = @transform_1, window_bounds = array<i64: 1, 128>}, {transform_indices = @transform_2, window_bounds = array<i64: 1, 128>}, {transform_indices = @transform_3, window_bounds = array<i64: 2, 128>}]} {
    %c0 = arith.constant 0 : index
    %c0_0 = arith.constant 0 : index
    %0 = vector.load %arg1[%c0, %c0_0] : memref<2x128xf32, #tpu.memory_space<vmem>>, vector<2x128xf32>
    %cst = arith.constant dense<0.000000e+00> : vector<128xf32>
    %1 = vector.multi_reduction <add>, %0, %cst [0] : vector<2x128xf32> to vector<128xf32>
    %2 = vector.shape_cast %1 : vector<128xf32> to vector<1x128xf32>
    %c32_i32 = arith.constant 32 : i32
    %3 = tpu.dynamic_rotate %2 by %c32_i32 dim 1 : vector<1x128xf32>, i32 -> vector<1x128xf32>
    %4 = arith.addf %2, %3 : vector<1x128xf32>
    %c64_i32 = arith.constant 64 : i32
    %5 = tpu.dynamic_rotate %4 by %c64_i32 dim 1 : vector<1x128xf32>, i32 -> vector<1x128xf32>
    %6 = arith.addf %4, %5 : vector<1x128xf32>
    %7 = arith.mulf %0, %0 : vector<2x128xf32>
    %cst_1 = arith.constant dense<0.000000e+00> : vector<128xf32>
    %8 = vector.multi_reduction <add>, %7, %cst_1 [0] : vector<2x128xf32> to vector<128xf32>
    %9 = vector.shape_cast %8 : vector<128xf32> to vector<1x128xf32>
    %c32_i32_2 = arith.constant 32 : i32
    %10 = tpu.dynamic_rotate %9 by %c32_i32_2 dim 1 : vector<1x128xf32>, i32 -> vector<1x128xf32>
    %11 = arith.addf %9, %10 : vector<1x128xf32>
    %c64_i32_3 = arith.constant 64 : i32
    %12 = tpu.dynamic_rotate %11 by %c64_i32_3 dim 1 : vector<1x128xf32>, i32 -> vector<1x128xf32>
    %13 = arith.addf %11, %12 : vector<1x128xf32>
    %cst_4 = arith.constant 1.250000e-01 : f32
    %14 = vector.broadcast %cst_4 : f32 to vector<1x128xf32>
    %15 = arith.mulf %6, %14 : vector<1x128xf32>
    %cst_5 = arith.constant 1.250000e-01 : f32
    %16 = vector.broadcast %cst_5 : f32 to vector<1x128xf32>
    %17 = arith.mulf %13, %16 : vector<1x128xf32>
    %18 = arith.mulf %15, %15 : vector<1x128xf32>
    %19 = arith.subf %17, %18 : vector<1x128xf32>
    %cst_6 = arith.constant 0.000000e+00 : f32
    %20 = vector.broadcast %cst_6 : f32 to vector<1x128xf32>
    %21 = arith.maximumf %19, %20 : vector<1x128xf32>
    %cst_7 = arith.constant 9.99999974E-6 : f32
    %22 = vector.broadcast %cst_7 : f32 to vector<1x128xf32>
    %23 = arith.addf %21, %22 : vector<1x128xf32>
    %24 = math.rsqrt %23 : vector<1x128xf32>
    %c0_8 = arith.constant 0 : index
    %c0_9 = arith.constant 0 : index
    %25 = vector.load %arg2[%c0_8, %c0_9] : memref<1x128xf32, #tpu.memory_space<vmem>>, vector<1x128xf32>
    %26 = arith.mulf %24, %25 : vector<1x128xf32>
    %c0_10 = arith.constant 0 : index
    %c0_11 = arith.constant 0 : index
    %27 = vector.load %arg3[%c0_10, %c0_11] : memref<1x128xf32, #tpu.memory_space<vmem>>, vector<1x128xf32>
    %28 = arith.mulf %15, %26 : vector<1x128xf32>
    %29 = arith.subf %27, %28 : vector<1x128xf32>
    %c0_12 = arith.constant 0 : index
    %c0_13 = arith.constant 0 : index
    %30 = vector.load %arg1[%c0_12, %c0_13] : memref<2x128xf32, #tpu.memory_space<vmem>>, vector<2x128xf32>
    %31 = vector.broadcast %26 : vector<1x128xf32> to vector<2x128xf32>
    %32 = arith.mulf %30, %31 : vector<2x128xf32>
    %33 = vector.broadcast %29 : vector<1x128xf32> to vector<2x128xf32>
    %34 = arith.addf %32, %33 : vector<2x128xf32>
    %c0_14 = arith.constant 0 : index
    %c0_15 = arith.constant 0 : index
    %35 = vector.load %arg4[%c0_14, %c0_15] : memref<2x128xf32, #tpu.memory_space<vmem>>, vector<2x128xf32>
    tpu.vector_store %arg4[%c0_14, %c0_15], %34 {strides = array<i32>} : memref<2x128xf32, #tpu.memory_space<vmem>>, vector<2x128xf32>,
    return
  }
  func.func @transform_0(%arg0: i32) -> (i32, i32) {
    %c0_i32 = arith.constant 0 : i32
    %c0_i32_0 = arith.constant 0 : i32
    return %c0_i32, %arg0 : i32, i32
  }
  func.func @transform_1(%arg0: i32) -> (i32, i32) {
    %c0_i32 = arith.constant 0 : i32
    %c0_i32_0 = arith.constant 0 : i32
    return %c0_i32, %arg0 : i32, i32
  }
  func.func @transform_2(%arg0: i32) -> (i32, i32) {
    %c0_i32 = arith.constant 0 : i32
    %c0_i32_0 = arith.constant 0 : i32
    return %c0_i32, %arg0 : i32, i32
  }
  func.func @transform_3(%arg0: i32) -> (i32, i32) {
    %c0_i32 = arith.constant 0 : i32
    %c0_i32_0 = arith.constant 0 : i32
    return %c0_i32, %arg0 : i32, i32
  }
}

</mosaic_0001>

<llo_original>
// kernel: tpu_custom_call.1
$region0: #{tpu_custom_call.1}
  #allocation0 [shape = 'u32[]', space=smem, size = 0x4, offset = 0x4, fixed_abs, tag = 'smem constant byte address 0x4 - core index']
  #allocation1 [shape = 'u32[72,128]{1,0:T(1,128)}', space=vmem, size = 0x9000, scoped, tag = 'internal scratch']
  %s0 = inlined_call_operand.hbm [shape: f32[2,128], index: 0, kind: input, shape index: {}]
  %s1 = inlined_call_operand.hbm [shape: f32[1,128], index: 1, kind: input, shape index: {}]
  %s2 = inlined_call_operand.vmem [shape: f32[1,128], index: 2, kind: input, shape index: {}]
  %s3 = inlined_call_operand.hbm [shape: f32[2,128], index: 3, kind: output, shape index: {}]
  %s4 = sld [smem:[#allocation0]]
  $region30: #{tpu_custom_call.1} parent=0
    _
  %s6 = ssub.s32 1, %s4
  %s7 = scalar_select 0, %s6, %s4
  $region1: #{tpu_custom_call.1} parent=0
    #allocation2 [shape = 'u8[1024]{0}', space=vmem, size = 0x400, scoped, tag = 'input window, operand 0, single buffered']
    #allocation3 [shape = 's32[1]{0}', space=sflag, size = 0x4, scoped, tag = 'scoped memory for tpu_custom_call.1']
    #allocation4 [shape = 's32[1]{0}', space=sflag, size = 0x4, scoped, tag = 'scoped memory for tpu_custom_call.1']
    #allocation5 [shape = 'u8[512]{0}', space=vmem, size = 0x400, scoped, tag = 'input window, operand 1, single buffered']
    #allocation6 [shape = 's32[1]{0}', space=sflag, size = 0x4, scoped, tag = 'scoped memory for tpu_custom_call.1']
    #allocation7 [shape = 'u8[1024]{0}', space=vmem, size = 0x400, scoped, tag = 'output window, operand 0, single buffered']
    %8 = vsyncpa [#allocation3], 0
    %9 = vsyncpa [#allocation6], 0
    %10 = vsyncpa [#allocation4], 0
    // Predicated region
    $region2: #{tpu_custom_call.1} parent=1 // pred_check
      _
    $region3: #{tpu_custom_call.1} parent=1 // pred_check_branch
      %12 = sbr.rel (0) target = $region5
    $region4: #{tpu_custom_call.1} parent=1 // pred_region
      %14 = vsyncadd [#allocation3], 0
      %s16 = sshll.u32 %s0, 4
      %s17 = int_to_ptr.hbm [resolvable:$true] %s16
      %s18 = sshll.u32 [#allocation2], 4
      %s19 = int_to_ptr.vmem [resolvable:$true] %s18
      %21 = dma.hbm_to_vmem [thread:$0]  %s17, 32, %s19, [#allocation3]
    $region5: #{tpu_custom_call.1} parent=1 // pred_fallthru
      _
    // Predicated region
    $region6: #{tpu_custom_call.1} parent=1 // pred_check
      _
    $region7: #{tpu_custom_call.1} parent=1 // pred_check_branch
      %23 = sbr.rel (0) target = $region9
    $region8: #{tpu_custom_call.1} parent=1 // pred_region
      %25 = vsyncadd [#allocation6], 0
      %s27 = sshll.u32 %s1, 4
      %s28 = int_to_ptr.hbm [resolvable:$true] %s27
      %s29 = sshll.u32 [#allocation5], 4
      %s30 = int_to_ptr.vmem [resolvable:$true] %s29
      %32 = dma.hbm_to_vmem [thread:$0]  %s28, 16, %s30, [#allocation6]
    $region9: #{tpu_custom_call.1} parent=1 // pred_fallthru
      _
    // Predicated region
    $region10: #{tpu_custom_call.1} parent=1 // pred_check
      _
    $region11: #{tpu_custom_call.1} parent=1 // pred_check_branch
      %34 = sbr.rel (0) target = $region13
    $region12: #{tpu_custom_call.1} parent=1 // pred_region
      _
    $region13: #{tpu_custom_call.1} parent=1 // pred_fallthru
      _
    // Predicated region
    $region14: #{tpu_custom_call.1} parent=1 // pred_check
      _
    $region15: #{tpu_custom_call.1} parent=1 // pred_check_branch
      %36 = sbr.rel (0) target = $region17
    $region16: #{tpu_custom_call.1} parent=1 // pred_region
      %38 = dma.done [#allocation3], 32
    $region17: #{tpu_custom_call.1} parent=1 // pred_fallthru
      _
    // Predicated region
    $region18: #{tpu_custom_call.1} parent=1 // pred_check
      _
    $region19: #{tpu_custom_call.1} parent=1 // pred_check_branch
      %40 = sbr.rel (0) target = $region21
    $region20: #{tpu_custom_call.1} parent=1 // pred_region
      %42 = dma.done [#allocation6], 16
    $region21: #{tpu_custom_call.1} parent=1 // pred_fallthru
      _
    %v43 = vld [vmem:[#allocation2] sm:$0x3]
    %vm44 = vcmask 1041408
    %v45 = vsel %vm44, %v43, 0.0
    %v46 = vrot.slane %v45, 4
    %v47 = vadd.f32 %v45, %v46
    %v48 = vrot.slane %v47, 2
    %v49 = vadd.f32 %v47, %v48
    %v50 = vrot.slane %v49, 1
    %v51 = vadd.f32 %v49, %v50
    %52 = vrot.lane.b32.xlu0 %v51, 32
    %v53 = vpop.permute.xlu0 %52
    %v54 = vadd.f32 %v51, %v53
    %55 = vrot.lane.b32.xlu0 %v54, 64
    %v56 = vpop.permute.xlu0 %55
    %v57 = vadd.f32 %v54, %v56
    %v58 = vmul.f32 %v43, %v43
    %v59 = vsel %vm44, %v58, 0.0
    %v60 = vrot.slane %v59, 4
    %v61 = vadd.f32 %v59, %v60
    %v62 = vrot.slane %v61, 2
    %v63 = vadd.f32 %v61, %v62
    %v64 = vrot.slane %v63, 1
    %v65 = vadd.f32 %v63, %v64
    %66 = vrot.lane.b32.xlu0 %v65, 32
    %v67 = vpop.permute.xlu0 %66
    %v68 = vadd.f32 %v65, %v67
    %69 = vrot.lane.b32.xlu0 %v68, 64
    %v70 = vpop.permute.xlu0 %69
    %v71 = vadd.f32 %v68, %v70
    %v72 = vmul.f32 %v57, 0.125
    %v73 = vmul.f32 %v71, 0.125
    %v74 = vmul.f32 %v72, %v72
    %v75 = vsub.f32 %v73, %v74
    %v76 = vmax.f32 %v75, 0.0
    %v77 = vadd.f32 %v76, 1e-05
    %v78 = vrsqrt.pop %v77
    %v79 = vmul.f32 %v78, %v77
    %v80 = vmul.f32 %v79, %v78
    %v81 = vmul.f32 0.5, %v80
    %v82 = vsub.f32 1.5, %v81
    %v83 = vmul.f32 %v78, %v82
    %vm84 = vweird.f32 %v77
    %vm85 = vweird.f32 %v78
    %vm86 = vmor %vm84, %vm85
    %v87 = vsel %vm86, %v78, %v83
    %v88 = vld [vmem:[#allocation5] sm:$0x1]
    %v89 = vmul.f32 %v87, %v88
    %v90 = vld [vmem:[%s2] sm:$0x1]
    %v91 = vmul.f32 %v72, %v89
    %v92 = vsub.f32 %v90, %v91
    %v93 = vperm.slane %v89, 0
    %v94 = vmul.f32 %v43, %v93
    %v96 = vperm.slane %v92, 0
    %v98 = vadd.f32 %v94, %v96
    %99 = vst [vmem:[#allocation7] sm:$0x3] %v98
    // Predicated region
    $region22: #{tpu_custom_call.1} parent=1 // pred_check
      _
    $region23: #{tpu_custom_call.1} parent=1 // pred_check_branch
      %101 = sbr.rel (0) target = $region25
    $region24: #{tpu_custom_call.1} parent=1 // pred_region
      %103 = vsyncadd [#allocation4], 0
      %s105 = sshll.u32 [#allocation7], 4
      %s106 = int_to_ptr.vmem [resolvable:$true] %s105
      %s107 = sshll.u32 %s3, 4
      %s108 = int_to_ptr.hbm [resolvable:$true] %s107
      %110 = dma.vmem_to_hbm [thread:$0]  %s106, 32, %s108, [#allocation4]
    $region25: #{tpu_custom_call.1} parent=1 // pred_fallthru
      _
    // Predicated region
    $region26: #{tpu_custom_call.1} parent=1 // pred_check
      _
    $region27: #{tpu_custom_call.1} parent=1 // pred_check_branch
      %112 = sbr.rel (0) target = $region29
    $region28: #{tpu_custom_call.1} parent=1 // pred_region
      %114 = dma.done [#allocation4], 32
    $region29: #{tpu_custom_call.1} parent=1 // pred_fallthru
      _
    %115 = vsyncpa [#allocation3], 1
    %116 = vsyncpa [#allocation6], 1
    %117 = vsyncpa [#allocation4], 1

</llo_original>
